<compile_context>
chip_gen: v5e
topology: v5e:2x2
jax: 0.10.0
libtpu: 0.0.40
codegen_flags: <defaults>
</compile_context>

<pallas_src>
import jax
import jax.numpy as jnp
from jax.experimental import pallas as pl
from jax.experimental.pallas import tpu as pltpu

NO_OF_INPUTS = 10
NO_OF_OUTPUTS = 5
HIDDEN = 256
OUT_PAD = 128          # lane-dense padded width of the last layer
DEFAULT_TILE_B = 1024  # sized with headroom for v7x's 64 MiB VMEM


def _mlp_kernel(x_ref, w1_ref, b1_ref, w2_ref, b2_ref,
                w3_ref, b3_ref, w4_ref, b4_ref, o_ref):
    # Layer 1: (tile_b, 10) @ (10, 256), bf16 MXU inputs, f32 accumulate.
    h = jnp.dot(x_ref[...].astype(jnp.bfloat16), w1_ref[...],
                preferred_element_type=jnp.float32)
    h = jnp.maximum(h + b1_ref[...], 0.0)                      # f32 bias + ReLU
    # Layer 2
    h = jnp.dot(h.astype(jnp.bfloat16), w2_ref[...],
                preferred_element_type=jnp.float32)
    h = jnp.maximum(h + b2_ref[...], 0.0)
    # Layer 3
    h = jnp.dot(h.astype(jnp.bfloat16), w3_ref[...],
                preferred_element_type=jnp.float32)
    h = jnp.maximum(h + b3_ref[...], 0.0)
    # Layer 4 (no activation, lane-dense padded to 128 output columns)
    y = jnp.dot(h.astype(jnp.bfloat16), w4_ref[...],
                preferred_element_type=jnp.float32)
    o_ref[...] = (y + b4_ref[...]).astype(o_ref.dtype)


def prepare_params(params):
    """One-time conversion of PyTorch-layout f32 params into kernel layout.

    Weights -> (in, out) bf16, biases -> (1, out) f32.  The last layer is
    zero-padded from 5 to OUT_PAD columns so output stores are lane-dense.
    Do this once at init and reuse the result for every forward call.
    """
    prepared = []
    for i in range(1, 5):
        w = jnp.asarray(params[f"w{i}"], jnp.float32).T            # (in, out)
        b = jnp.asarray(params[f"b{i}"], jnp.float32).reshape(1, -1)
        if i == 4:
            w = jnp.pad(w, ((0, 0), (0, OUT_PAD - NO_OF_OUTPUTS)))
            b = jnp.pad(b, ((0, 0), (0, OUT_PAD - NO_OF_OUTPUTS)))
        prepared.append(w.astype(jnp.bfloat16))
        prepared.append(b)
    return tuple(prepared)


def cont_critic_net_forward(x, prepared_params, tile_b=DEFAULT_TILE_B):
    """x: (B, NO_OF_INPUTS) float32; prepared_params: output of prepare_params."""
    B = x.shape[0]
    # Cap tile at the (8-rounded) batch, keep it a multiple of 8 (sublane).
    tile_b = int(min(tile_b, ((B + 7) // 8) * 8))
    num_tiles = pl.cdiv(B, tile_b)
    b_pad = num_tiles * tile_b
    if b_pad != B:
        x = jnp.pad(x, ((0, b_pad - B), (0, 0)))

    w1, b1, w2, b2, w3, b3, w4, b4 = prepared_params

    def const(i):           # weights/biases: same block every grid step
        return (0, 0)

    grid_spec = pltpu.PrefetchScalarGridSpec(
        num_scalar_prefetch=0,
        grid=(num_tiles,),
        in_specs=[
            pl.BlockSpec((tile_b, NO_OF_INPUTS), lambda i: (i, 0)),
            pl.BlockSpec((NO_OF_INPUTS, HIDDEN), const),
            pl.BlockSpec((1, HIDDEN), const),
            pl.BlockSpec((HIDDEN, HIDDEN), const),
            pl.BlockSpec((1, HIDDEN), const),
            pl.BlockSpec((HIDDEN, HIDDEN), const),
            pl.BlockSpec((1, HIDDEN), const),
            pl.BlockSpec((HIDDEN, OUT_PAD), const),
            pl.BlockSpec((1, OUT_PAD), const),
        ],
        out_specs=pl.BlockSpec((tile_b, OUT_PAD), lambda i: (i, 0)),
    )

    out_padded = pl.pallas_call(
        _mlp_kernel,
        out_shape=jax.ShapeDtypeStruct((b_pad, OUT_PAD), jnp.float32),
        grid_spec=grid_spec,
        compiler_params=pltpu.CompilerParams(
            dimension_semantics=("parallel",),
        ),
    )(x, w1, b1, w2, b2, w3, b3, w4, b4)

    return out_padded[:B, :NO_OF_OUTPUTS]


def init_params(key):
    """PyTorch nn.Linear default init: U(-1/sqrt(fan_in), 1/sqrt(fan_in))."""
    dims = [(NO_OF_INPUTS, HIDDEN), (HIDDEN, HIDDEN),
            (HIDDEN, HIDDEN), (HIDDEN, NO_OF_OUTPUTS)]
    params = {}
    for i, (fan_in, fan_out) in enumerate(dims, start=1):
        key, kw, kb = jax.random.split(key, 3)
        bound = 1.0 / jnp.sqrt(float(fan_in))
        # PyTorch stores weight as (out_features, in_features)
        params[f"w{i}"] = jax.random.uniform(kw, (fan_out, fan_in),
                                             jnp.float32, -bound, bound)
        params[f"b{i}"] = jax.random.uniform(kb, (fan_out,),
                                             jnp.float32, -bound, bound)
    return params


def reference_forward_f32(x, params):
    h = x
    for i in range(1, 5):
        h = h @ params[f"w{i}"].T + params[f"b{i}"]
        if i < 4:
            h = jnp.maximum(h, 0.0)
    return h


def reference_forward_bf16(x, prepared_params):
    """Mimics the kernel's bf16-input / f32-accumulate numerics."""
    w1, b1, w2, b2, w3, b3, w4, b4 = prepared_params
    h = jnp.dot(x.astype(jnp.bfloat16), w1, preferred_element_type=jnp.float32)
    h = jnp.maximum(h + b1, 0.0)
    h = jnp.dot(h.astype(jnp.bfloat16), w2, preferred_element_type=jnp.float32)
    h = jnp.maximum(h + b2, 0.0)
    h = jnp.dot(h.astype(jnp.bfloat16), w3, preferred_element_type=jnp.float32)
    h = jnp.maximum(h + b3, 0.0)
    y = jnp.dot(h.astype(jnp.bfloat16), w4, preferred_element_type=jnp.float32) + b4
    return y[:, :NO_OF_OUTPUTS]


if __name__ == "__main__":
    key = jax.random.PRNGKey(0)
    key, kx = jax.random.split(key)
    B = 8
    x = jax.random.normal(kx, (B, NO_OF_INPUTS), jnp.float32)

    params = init_params(key)
    prepared = prepare_params(params)   # one-time conversion, reused per call

    y = cont_critic_net_forward(x, prepared)
    y = jax.block_until_ready(y)
    assert y.shape == (B, NO_OF_OUTPUTS)

    # Tight check against a reference that uses identical bf16 numerics.
    y_bf16_ref = reference_forward_bf16(x, prepared)
    assert jnp.allclose(y, y_bf16_ref, atol=2e-3, rtol=2e-3), \
        "Pallas kernel mismatch vs bf16 reference"

    # Looser sanity check against the full-f32 PyTorch-equivalent forward.
    y_f32_ref = reference_forward_f32(x, params)
    assert jnp.allclose(y, y_f32_ref, atol=3e-2, rtol=3e-2), \
        "Pallas kernel mismatch vs f32 reference"

    print("KERNEL_OK")
</pallas_src>

<mosaic_0001>
module attributes {stable_mosaic.version = 11 : i64} {
  func.func @_mlp_kernel(%arg0: i32, %arg1: memref<8x10xf32, #tpu.memory_space<vmem>>, %arg2: memref<10x256xbf16, #tpu.memory_space<vmem>>, %arg3: memref<1x256xf32, #tpu.memory_space<vmem>>, %arg4: memref<256x256xbf16, #tpu.memory_space<vmem>>, %arg5: memref<1x256xf32, #tpu.memory_space<vmem>>, %arg6: memref<256x256xbf16, #tpu.memory_space<vmem>>, %arg7: memref<1x256xf32, #tpu.memory_space<vmem>>, %arg8: memref<256x128xbf16, #tpu.memory_space<vmem>>, %arg9: memref<1x128xf32, #tpu.memory_space<vmem>>, %arg10: memref<8x128xf32, #tpu.memory_space<vmem>>) attributes {dimension_semantics = [#tpu.dimension_semantics<parallel>], iteration_bounds = array<i64: 1>, scalar_prefetch = 0 : i64, scratch_operands = 0 : i64, tpu.core_type = #tpu.core_type<tc>, window_params = [{transform_indices = @transform_0, window_bounds = array<i64: 8, 10>}, {pipeline_mode = #tpu.pipeline_mode<synchronous>, transform_indices = @transform_1, window_bounds = array<i64: 10, 256>}, {pipeline_mode = #tpu.pipeline_mode<synchronous>, transform_indices = @transform_2, window_bounds = array<i64: 1, 256>}, {pipeline_mode = #tpu.pipeline_mode<synchronous>, transform_indices = @transform_3, window_bounds = array<i64: 256, 256>}, {pipeline_mode = #tpu.pipeline_mode<synchronous>, transform_indices = @transform_4, window_bounds = array<i64: 1, 256>}, {pipeline_mode = #tpu.pipeline_mode<synchronous>, transform_indices = @transform_5, window_bounds = array<i64: 256, 256>}, {pipeline_mode = #tpu.pipeline_mode<synchronous>, transform_indices = @transform_6, window_bounds = array<i64: 1, 256>}, {pipeline_mode = #tpu.pipeline_mode<synchronous>, transform_indices = @transform_7, window_bounds = array<i64: 256, 128>}, {pipeline_mode = #tpu.pipeline_mode<synchronous>, transform_indices = @transform_8, window_bounds = array<i64: 1, 128>}, {transform_indices = @transform_9, window_bounds = array<i64: 8, 128>}]} {
    %c0 = arith.constant 0 : index
    %c0_0 = arith.constant 0 : index
    %0 = vector.load %arg1[%c0, %c0_0] : memref<8x10xf32, #tpu.memory_space<vmem>>, vector<8x10xf32>
    %1 = arith.truncf %0 : vector<8x10xf32> to vector<8x10xbf16>
    %c0_1 = arith.constant 0 : index
    %c0_2 = arith.constant 0 : index
    %2 = vector.load %arg2[%c0_1, %c0_2] : memref<10x256xbf16, #tpu.memory_space<vmem>>, vector<10x256xbf16>
    %cst = arith.constant dense<0.000000e+00> : vector<8x256xf32>
    %3 = tpu.matmul %1, %2, %cst {dimension_numbers = #tpu.dot_dimension_numbers<[1], [0], [0], [1], [0, 0, 1, 1], [], []>} : vector<8x10xbf16>, vector<10x256xbf16>, vector<8x256xf32> -> vector<8x256xf32>
    %c0_3 = arith.constant 0 : index
    %c0_4 = arith.constant 0 : index
    %4 = vector.load %arg3[%c0_3, %c0_4] : memref<1x256xf32, #tpu.memory_space<vmem>>, vector<1x256xf32>
    %5 = vector.broadcast %4 : vector<1x256xf32> to vector<8x256xf32>
    %6 = arith.addf %3, %5 : vector<8x256xf32>
    %cst_5 = arith.constant 0.000000e+00 : f32
    %7 = vector.broadcast %cst_5 : f32 to vector<8x256xf32>
    %8 = arith.maximumf %6, %7 : vector<8x256xf32>
    %9 = arith.truncf %8 : vector<8x256xf32> to vector<8x256xbf16>
    %c0_6 = arith.constant 0 : index
    %c0_7 = arith.constant 0 : index
    %10 = vector.load %arg4[%c0_6, %c0_7] : memref<256x256xbf16, #tpu.memory_space<vmem>>, vector<256x256xbf16>
    %cst_8 = arith.constant dense<0.000000e+00> : vector<8x256xf32>
    %11 = tpu.matmul %9, %10, %cst_8 {dimension_numbers = #tpu.dot_dimension_numbers<[1], [0], [0], [1], [0, 0, 1, 1], [], []>} : vector<8x256xbf16>, vector<256x256xbf16>, vector<8x256xf32> -> vector<8x256xf32>
    %c0_9 = arith.constant 0 : index
    %c0_10 = arith.constant 0 : index
    %12 = vector.load %arg5[%c0_9, %c0_10] : memref<1x256xf32, #tpu.memory_space<vmem>>, vector<1x256xf32>
    %13 = vector.broadcast %12 : vector<1x256xf32> to vector<8x256xf32>
    %14 = arith.addf %11, %13 : vector<8x256xf32>
    %cst_11 = arith.constant 0.000000e+00 : f32
    %15 = vector.broadcast %cst_11 : f32 to vector<8x256xf32>
    %16 = arith.maximumf %14, %15 : vector<8x256xf32>
    %17 = arith.truncf %16 : vector<8x256xf32> to vector<8x256xbf16>
    %c0_12 = arith.constant 0 : index
    %c0_13 = arith.constant 0 : index
    %18 = vector.load %arg6[%c0_12, %c0_13] : memref<256x256xbf16, #tpu.memory_space<vmem>>, vector<256x256xbf16>
    %cst_14 = arith.constant dense<0.000000e+00> : vector<8x256xf32>
    %19 = tpu.matmul %17, %18, %cst_14 {dimension_numbers = #tpu.dot_dimension_numbers<[1], [0], [0], [1], [0, 0, 1, 1], [], []>} : vector<8x256xbf16>, vector<256x256xbf16>, vector<8x256xf32> -> vector<8x256xf32>
    %c0_15 = arith.constant 0 : index
    %c0_16 = arith.constant 0 : index
    %20 = vector.load %arg7[%c0_15, %c0_16] : memref<1x256xf32, #tpu.memory_space<vmem>>, vector<1x256xf32>
    %21 = vector.broadcast %20 : vector<1x256xf32> to vector<8x256xf32>
    %22 = arith.addf %19, %21 : vector<8x256xf32>
    %cst_17 = arith.constant 0.000000e+00 : f32
    %23 = vector.broadcast %cst_17 : f32 to vector<8x256xf32>
    %24 = arith.maximumf %22, %23 : vector<8x256xf32>
    %25 = arith.truncf %24 : vector<8x256xf32> to vector<8x256xbf16>
    %c0_18 = arith.constant 0 : index
    %c0_19 = arith.constant 0 : index
    %26 = vector.load %arg8[%c0_18, %c0_19] : memref<256x128xbf16, #tpu.memory_space<vmem>>, vector<256x128xbf16>
    %cst_20 = arith.constant dense<0.000000e+00> : vector<8x128xf32>
    %27 = tpu.matmul %25, %26, %cst_20 {dimension_numbers = #tpu.dot_dimension_numbers<[1], [0], [0], [1], [0, 0, 1, 1], [], []>} : vector<8x256xbf16>, vector<256x128xbf16>, vector<8x128xf32> -> vector<8x128xf32>
    %c0_21 = arith.constant 0 : index
    %c0_22 = arith.constant 0 : index
    %28 = vector.load %arg9[%c0_21, %c0_22] : memref<1x128xf32, #tpu.memory_space<vmem>>, vector<1x128xf32>
    %29 = vector.broadcast %28 : vector<1x128xf32> to vector<8x128xf32>
    %30 = arith.addf %27, %29 : vector<8x128xf32>
    %c0_23 = arith.constant 0 : index
    %c0_24 = arith.constant 0 : index
    %31 = vector.load %arg10[%c0_23, %c0_24] : memref<8x128xf32, #tpu.memory_space<vmem>>, vector<8x128xf32>
    tpu.vector_store %arg10[%c0_23, %c0_24], %30 {strides = array<i32>} : memref<8x128xf32, #tpu.memory_space<vmem>>, vector<8x128xf32>,
    return
  }
  func.func @transform_0(%arg0: i32) -> (i32, i32) {
    %c0_i32 = arith.constant 0 : i32
    %c0_i32_0 = arith.constant 0 : i32
    return %arg0, %c0_i32 : i32, i32
  }
  func.func @transform_1(%arg0: i32) -> (i32, i32) {
    %c0_i32 = arith.constant 0 : i32
    %c0_i32_0 = arith.constant 0 : i32
    %c0_i32_1 = arith.constant 0 : i32
    return %c0_i32, %c0_i32_0 : i32, i32
  }
  func.func @transform_2(%arg0: i32) -> (i32, i32) {
    %c0_i32 = arith.constant 0 : i32
    %c0_i32_0 = arith.constant 0 : i32
    %c0_i32_1 = arith.constant 0 : i32
    return %c0_i32, %c0_i32_0 : i32, i32
  }
  func.func @transform_3(%arg0: i32) -> (i32, i32) {
    %c0_i32 = arith.constant 0 : i32
    %c0_i32_0 = arith.constant 0 : i32
    %c0_i32_1 = arith.constant 0 : i32
    return %c0_i32, %c0_i32_0 : i32, i32
  }
  func.func @transform_4(%arg0: i32) -> (i32, i32) {
    %c0_i32 = arith.constant 0 : i32
    %c0_i32_0 = arith.constant 0 : i32
    %c0_i32_1 = arith.constant 0 : i32
    return %c0_i32, %c0_i32_0 : i32, i32
  }
  func.func @transform_5(%arg0: i32) -> (i32, i32) {
    %c0_i32 = arith.constant 0 : i32
    %c0_i32_0 = arith.constant 0 : i32
    %c0_i32_1 = arith.constant 0 : i32
    return %c0_i32, %c0_i32_0 : i32, i32
  }
  func.func @transform_6(%arg0: i32) -> (i32, i32) {
    %c0_i32 = arith.constant 0 : i32
    %c0_i32_0 = arith.constant 0 : i32
    %c0_i32_1 = arith.constant 0 : i32
    return %c0_i32, %c0_i32_0 : i32, i32
  }
  func.func @transform_7(%arg0: i32) -> (i32, i32) {
    %c0_i32 = arith.constant 0 : i32
    %c0_i32_0 = arith.constant 0 : i32
    %c0_i32_1 = arith.constant 0 : i32
    return %c0_i32, %c0_i32_0 : i32, i32
  }
  func.func @transform_8(%arg0: i32) -> (i32, i32) {
    %c0_i32 = arith.constant 0 : i32
    %c0_i32_0 = arith.constant 0 : i32
    %c0_i32_1 = arith.constant 0 : i32
    return %c0_i32, %c0_i32_0 : i32, i32
  }
  func.func @transform_9(%arg0: i32) -> (i32, i32) {
    %c0_i32 = arith.constant 0 : i32
    %c0_i32_0 = arith.constant 0 : i32
    return %arg0, %c0_i32 : i32, i32
  }
}

</mosaic_0001>

<llo_original>
// kernel: tpu_custom_call.1
$region0: #{tpu_custom_call.1}
  #allocation0 [shape = 'u32[]', space=smem, size = 0x4, offset = 0x4, fixed_abs, tag = 'smem constant byte address 0x4 - core index']
  #allocation1 [shape = 'u32[72,128]{1,0:T(1,128)}', space=vmem, size = 0x9000, scoped, tag = 'internal scratch']
  %s0 = inlined_call_operand.hbm [shape: f32[8,10], index: 0, kind: input, shape index: {}]
  %s1 = inlined_call_operand.hbm [shape: bf16[10,256], index: 1, kind: input, shape index: {}]
  %s2 = inlined_call_operand.hbm [shape: f32[1,256], index: 2, kind: input, shape index: {}]
  %s3 = inlined_call_operand.hbm [shape: bf16[256,256], index: 3, kind: input, shape index: {}]
  %s4 = inlined_call_operand.vmem [shape: f32[1,256], index: 4, kind: input, shape index: {}]
  %s5 = inlined_call_operand.hbm [shape: bf16[256,256], index: 5, kind: input, shape index: {}]
  %s6 = inlined_call_operand.vmem [shape: f32[1,256], index: 6, kind: input, shape index: {}]
  %s7 = inlined_call_operand.hbm [shape: bf16[256,128], index: 7, kind: input, shape index: {}]
  %s8 = inlined_call_operand.vmem [shape: f32[1,128], index: 8, kind: input, shape index: {}]
  %s9 = inlined_call_operand.hbm [shape: f32[8,128], index: 9, kind: output, shape index: {}]
  %s10 = sld [smem:[#allocation0]]
  $region70: #{tpu_custom_call.1} parent=0
    _
  %s12 = ssub.s32 1, %s10
  %s13 = scalar_select 0, %s12, %s10
  $region1: #{tpu_custom_call.1} parent=0
    #allocation2 [shape = 'u8[4096]{0}', space=vmem, size = 0x1000, scoped, tag = 'input window, operand 0, single buffered']
    #allocation3 [shape = 's32[1]{0}', space=sflag, size = 0x4, scoped, tag = 'scoped memory for tpu_custom_call.1']
    #allocation4 [shape = 's32[1]{0}', space=sflag, size = 0x4, scoped, tag = 'scoped memory for tpu_custom_call.1']
    #allocation5 [shape = 'u8[8192]{0}', space=vmem, size = 0x2000, scoped, tag = 'input window, operand 1, single buffered']
    #allocation6 [shape = 's32[1]{0}', space=sflag, size = 0x4, scoped, tag = 'scoped memory for tpu_custom_call.1']
    #allocation7 [shape = 'u8[1024]{0}', space=vmem, size = 0x400, scoped, tag = 'input window, operand 2, single buffered']
    #allocation8 [shape = 'u8[131072]{0}', space=vmem, size = 0x20000, scoped, tag = 'input window, operand 3, single buffered']
    #allocation9 [shape = 's32[1]{0}', space=sflag, size = 0x4, scoped, tag = 'scoped memory for tpu_custom_call.1']
    #allocation10 [shape = 'u8[131072]{0}', space=vmem, size = 0x20000, scoped, tag = 'input window, operand 5, single buffered']
    #allocation11 [shape = 'u8[65536]{0}', space=vmem, size = 0x10000, scoped, tag = 'input window, operand 7, single buffered']
    #allocation12 [shape = 's32[1]{0}', space=sflag, size = 0x4, scoped, tag = 'scoped memory for tpu_custom_call.1']
    #allocation13 [shape = 'u8[4096]{0}', space=vmem, size = 0x1000, scoped, tag = 'output window, operand 0, single buffered']
    %14 = vsyncpa [#allocation3], 0
    %15 = vsyncpa [#allocation6], 0
    %16 = vsyncpa [#allocation9], 0
    %17 = vsyncpa [#allocation12], 0
    %18 = vsyncpa [#allocation4], 0
    // Predicated region
    $region2: #{tpu_custom_call.1} parent=1 // pred_check
      _
    $region3: #{tpu_custom_call.1} parent=1 // pred_check_branch
      %20 = sbr.rel (0) target = $region5
    $region4: #{tpu_custom_call.1} parent=1 // pred_region
      %22 = vsyncadd [#allocation3], 0
      %s24 = sshll.u32 %s0, 4
      %s25 = int_to_ptr.hbm [resolvable:$true] %s24
      %s26 = sshll.u32 [#allocation2], 4
      %s27 = int_to_ptr.vmem [resolvable:$true] %s26
      %29 = dma.hbm_to_vmem [thread:$0]  %s25, 128, %s27, [#allocation3]
    $region5: #{tpu_custom_call.1} parent=1 // pred_fallthru
      _
    // Predicated region
    $region6: #{tpu_custom_call.1} parent=1 // pred_check
      _
    $region7: #{tpu_custom_call.1} parent=1 // pred_check_branch
      %31 = sbr.rel (0) target = $region9
    $region8: #{tpu_custom_call.1} parent=1 // pred_region
      %33 = vsyncadd [#allocation6], 0
      %s34 = sshll.u32 %s1, 4
      %s35 = int_to_ptr.hbm [resolvable:$true] %s34
      %s36 = sshll.u32 [#allocation5], 4
      %s37 = int_to_ptr.vmem [resolvable:$true] %s36
      %42 = dma.hbm_to_vmem [thread:$0]  %s35, 256, %s37, [#allocation6], 128, 128, 8
    $region9: #{tpu_custom_call.1} parent=1 // pred_fallthru
      _
    // Predicated region
    $region10: #{tpu_custom_call.1} parent=1 // pred_check
      _
    $region11: #{tpu_custom_call.1} parent=1 // pred_check_branch
      %44 = sbr.rel (0) target = $region13
    $region12: #{tpu_custom_call.1} parent=1 // pred_region
      %46 = vsyncadd [#allocation6], 0
      %s48 = sshll.u32 %s2, 4
      %s49 = int_to_ptr.hbm [resolvable:$true] %s48
      %s50 = sshll.u32 [#allocation7], 4
      %s51 = int_to_ptr.vmem [resolvable:$true] %s50
      %53 = dma.hbm_to_vmem [thread:$0]  %s49, 32, %s51, [#allocation6]
    $region13: #{tpu_custom_call.1} parent=1 // pred_fallthru
      _
    // Predicated region
    $region14: #{tpu_custom_call.1} parent=1 // pred_check
      _
    $region15: #{tpu_custom_call.1} parent=1 // pred_check_branch
      %55 = sbr.rel (0) target = $region17
    $region16: #{tpu_custom_call.1} parent=1 // pred_region
      %57 = vsyncadd [#allocation9], 0
      %s58 = sshll.u32 %s3, 4
      %s59 = int_to_ptr.hbm [resolvable:$true] %s58
      %s60 = sshll.u32 [#allocation8], 4
      %s61 = int_to_ptr.vmem [resolvable:$true] %s60
      %66 = dma.hbm_to_vmem [thread:$0]  %s59, 4096, %s61, [#allocation9], 128, 128, 8
    $region17: #{tpu_custom_call.1} parent=1 // pred_fallthru
      _
    // Predicated region
    $region18: #{tpu_custom_call.1} parent=1 // pred_check
      _
    $region19: #{tpu_custom_call.1} parent=1 // pred_check_branch
      %68 = sbr.rel (0) target = $region21
    $region20: #{tpu_custom_call.1} parent=1 // pred_region
      _
    $region21: #{tpu_custom_call.1} parent=1 // pred_fallthru
      _
    // Predicated region
    $region22: #{tpu_custom_call.1} parent=1 // pred_check
      _
    $region23: #{tpu_custom_call.1} parent=1 // pred_check_branch
      %70 = sbr.rel (0) target = $region25
    $region24: #{tpu_custom_call.1} parent=1 // pred_region
      %72 = vsyncadd [#allocation9], 0
      %s73 = sshll.u32 %s5, 4
      %s74 = int_to_ptr.hbm [resolvable:$true] %s73
      %s75 = sshll.u32 [#allocation10], 4
      %s76 = int_to_ptr.vmem [resolvable:$true] %s75
      %81 = dma.hbm_to_vmem [thread:$0]  %s74, 4096, %s76, [#allocation9], 128, 128, 8
    $region25: #{tpu_custom_call.1} parent=1 // pred_fallthru
      _
    // Predicated region
    $region26: #{tpu_custom_call.1} parent=1 // pred_check
      _
    $region27: #{tpu_custom_call.1} parent=1 // pred_check_branch
      %83 = sbr.rel (0) target = $region29
    $region28: #{tpu_custom_call.1} parent=1 // pred_region
      _
    $region29: #{tpu_custom_call.1} parent=1 // pred_fallthru
      _
    // Predicated region
    $region30: #{tpu_custom_call.1} parent=1 // pred_check
      _
    $region31: #{tpu_custom_call.1} parent=1 // pred_check_branch
      %85 = sbr.rel (0) target = $region33
    $region32: #{tpu_custom_call.1} parent=1 // pred_region
      %87 = vsyncadd [#allocation12], 0
      %s88 = sshll.u32 %s7, 4
      %s89 = int_to_ptr.hbm [resolvable:$true] %s88
      %s90 = sshll.u32 [#allocation11], 4
      %s91 = int_to_ptr.vmem [resolvable:$true] %s90
      %96 = dma.hbm_to_vmem [thread:$0]  %s89, 2048, %s91, [#allocation12], 64, 64, 4
    $region33: #{tpu_custom_call.1} parent=1 // pred_fallthru
      _
    // Predicated region
    $region34: #{tpu_custom_call.1} parent=1 // pred_check
      _
    $region35: #{tpu_custom_call.1} parent=1 // pred_check_branch
      %98 = sbr.rel (0) target = $region37
    $region36: #{tpu_custom_call.1} parent=1 // pred_region
      _
    $region37: #{tpu_custom_call.1} parent=1 // pred_fallthru
      _
    // Predicated region
    $region38: #{tpu_custom_call.1} parent=1 // pred_check
      _
    $region39: #{tpu_custom_call.1} parent=1 // pred_check_branch
      %100 = sbr.rel (0) target = $region41
    $region40: #{tpu_custom_call.1} parent=1 // pred_region
      %102 = dma.done [#allocation3], 128
    $region41: #{tpu_custom_call.1} parent=1 // pred_fallthru
      _
    // Predicated region
    $region42: #{tpu_custom_call.1} parent=1 // pred_check
      _
    $region43: #{tpu_custom_call.1} parent=1 // pred_check_branch
      %104 = sbr.rel (0) target = $region45
    $region44: #{tpu_custom_call.1} parent=1 // pred_region
      %106 = dma.done [#allocation6], 256
    $region45: #{tpu_custom_call.1} parent=1 // pred_fallthru
      _
    // Predicated region
    $region46: #{tpu_custom_call.1} parent=1 // pred_check
      _
    $region47: #{tpu_custom_call.1} parent=1 // pred_check_branch
      %108 = sbr.rel (0) target = $region49
    $region48: #{tpu_custom_call.1} parent=1 // pred_region
      %110 = dma.done [#allocation6], 32
    $region49: #{tpu_custom_call.1} parent=1 // pred_fallthru
      _
    // Predicated region
    $region50: #{tpu_custom_call.1} parent=1 // pred_check
      _
    $region51: #{tpu_custom_call.1} parent=1 // pred_check_branch
      %112 = sbr.rel (0) target = $region53
    $region52: #{tpu_custom_call.1} parent=1 // pred_region
      %114 = dma.done [#allocation9], 4096
    $region53: #{tpu_custom_call.1} parent=1 // pred_fallthru
      _
    // Predicated region
    $region54: #{tpu_custom_call.1} parent=1 // pred_check
      _
    $region55: #{tpu_custom_call.1} parent=1 // pred_check_branch
      %116 = sbr.rel (0) target = $region57
    $region56: #{tpu_custom_call.1} parent=1 // pred_region
      %118 = dma.done [#allocation9], 4096
    $region57: #{tpu_custom_call.1} parent=1 // pred_fallthru
      _
    // Predicated region
    $region58: #{tpu_custom_call.1} parent=1 // pred_check
      _
    $region59: #{tpu_custom_call.1} parent=1 // pred_check_branch
      %120 = sbr.rel (0) target = $region61
    $region60: #{tpu_custom_call.1} parent=1 // pred_region
      %122 = dma.done [#allocation12], 2048
    $region61: #{tpu_custom_call.1} parent=1 // pred_fallthru
      _
    %v124 = vld [vmem:[#allocation2] sm:$0xff]
    %v125 = vpack.c.bf16 %v124, %v124
    %v126 = vld [vmem:[#allocation5] sm:$0xff]
    %v127 = vld [vmem:[#allocation5 + $0x8] sm:$0x11]
    %v128 = vld [vmem:[#allocation7] sm:$0x3]
    %v130 = vperm.slane %v128, 0
    %v131 = vperm.slane %v128, 1
    %v136 = vunpack.c.l.b16 %v126
    %v137 = vunpack.c.h.b16 %v126
    %v138 = vunpack.c.l.b16 %v127
    %v139 = vunpack.c.h.b16 %v127
    %v140 = vpack.c.b16 %v138, %v136
    %v141 = vpack.c.b16 %v139, %v137
    %vm142 = vcmask 80896
    %v144 = vsel %vm142, %v125, 0
    %vm146 = vcmask 1044480
    %v148 = vsel %vm146, %v140, 0
    %v151 = vsel %vm146, %v141, 0
    %153 = vmatpush.bf16.msra.mxu0 0
    %154 = vmatpush.bf16.msra.mxu0 0
    %155 = vmatpush.bf16.msra.mxu0 0
    %156 = vmatpush.bf16.msra.mxu0 0
    %157 = vmatpush.bf16.msra.mxu0 0
    %158 = vmatpush.bf16.msra.mxu0 0
    %159 = vmatpush.bf16.msra.mxu0 0
    %160 = vmatpush.bf16.msra.mxu0 %v148
    %161 = vmatmul.bf16.gmra.mxu0 %v144
    %v162 = vpop.f32.mrf.mxu0
    %v163 = vadd.f32 %v130, %v162
    %v164 = vpop.f32.mrf.mxu0
    %165 = vdwg.mxu0
    %166 = vmatpush.bf16.msra.mxu0 0
    %167 = vmatpush.bf16.msra.mxu0 0
    %168 = vmatpush.bf16.msra.mxu0 0
    %169 = vmatpush.bf16.msra.mxu0 0
    %170 = vmatpush.bf16.msra.mxu0 0
    %171 = vmatpush.bf16.msra.mxu0 0
    %172 = vmatpush.bf16.msra.mxu0 0
    %173 = vmatpush.bf16.msra.mxu0 %v151
    %174 = vmatmul.bf16.gmra.mxu0 %v144
    %v175 = vpop.f32.mrf.mxu0
    %v176 = vadd.f32 %v131, %v175
    %v177 = vpop.f32.mrf.mxu0
    %178 = vdwg.mxu0
    %v179 = vmax.f32 %v163, 0.0
    %v180 = vmax.f32 %v176, 0.0
    %v181 = vpack.c.bf16 %v179, %v179
    %v182 = vpack.c.bf16 %v180, %v180
    %v183 = vld [vmem:[#allocation8] sm:$0xff]
    %v184 = vld [vmem:[#allocation8 + $0x8] sm:$0xff]
    %v185 = vld [vmem:[#allocation8 + $0x10] sm:$0xff]
    %v186 = vld [vmem:[#allocation8 + $0x18] sm:$0xff]
    %v187 = vld [vmem:[#allocation8 + $0x20] sm:$0xff]
    %v188 = vld [vmem:[#allocation8 + $0x28] sm:$0xff]
    %v189 = vld [vmem:[#allocation8 + $0x30] sm:$0xff]
    %v190 = vld [vmem:[#allocation8 + $0x38] sm:$0xff]
    %v191 = vld [vmem:[#allocation8 + $0x40] sm:$0xff]
    %v192 = vld [vmem:[#allocation8 + $0x48] sm:$0xff]
    %v193 = vld [vmem:[#allocation8 + $0x50] sm:$0xff]
    %v194 = vld [vmem:[#allocation8 + $0x58] sm:$0xff]
    %v195 = vld [vmem:[#allocation8 + $0x60] sm:$0xff]
    %v196 = vld [vmem:[#allocation8 + $0x68] sm:$0xff]
    %v197 = vld [vmem:[#allocation8 + $0x70] sm:$0xff]
    %v198 = vld [vmem:[#allocation8 + $0x78] sm:$0xff]
    %v199 = vld [vmem:[#allocation8 + $0x80] sm:$0xff]
    %v200 = vld [vmem:[#allocation8 + $0x88] sm:$0xff]
    %v201 = vld [vmem:[#allocation8 + $0x90] sm:$0xff]
    %v202 = vld [vmem:[#allocation8 + $0x98] sm:$0xff]
    %v203 = vld [vmem:[#allocation8 + $0xa0] sm:$0xff]
    %v204 = vld [vmem:[#allocation8 + $0xa8] sm:$0xff]
    %v205 = vld [vmem:[#allocation8 + $0xb0] sm:$0xff]
    %v206 = vld [vmem:[#allocation8 + $0xb8] sm:$0xff]
    %v207 = vld [vmem:[#allocation8 + $0xc0] sm:$0xff]
    %v208 = vld [vmem:[#allocation8 + $0xc8] sm:$0xff]
    %v209 = vld [vmem:[#allocation8 + $0xd0] sm:$0xff]
    %v210 = vld [vmem:[#allocation8 + $0xd8] sm:$0xff]
    %v211 = vld [vmem:[#allocation8 + $0xe0] sm:$0xff]
    %v212 = vld [vmem:[#allocation8 + $0xe8] sm:$0xff]
    %v213 = vld [vmem:[#allocation8 + $0xf0] sm:$0xff]
    %v214 = vld [vmem:[#allocation8 + $0xf8] sm:$0xff]
    %v215 = vld [vmem:[%s4] sm:$0x3]
    %v217 = vperm.slane %v215, 0
    %v218 = vperm.slane %v215, 1
    %v253 = vunpack.c.l.b16 %v183
    %v254 = vunpack.c.h.b16 %v183
    %v255 = vunpack.c.l.b16 %v184
    %v256 = vunpack.c.h.b16 %v184
    %v257 = vunpack.c.l.b16 %v185
    %v258 = vunpack.c.h.b16 %v185
    %v259 = vunpack.c.l.b16 %v186
    %v260 = vunpack.c.h.b16 %v186
    %v261 = vunpack.c.l.b16 %v187
    %v262 = vunpack.c.h.b16 %v187
    %v263 = vunpack.c.l.b16 %v188
    %v264 = vunpack.c.h.b16 %v188
    %v265 = vunpack.c.l.b16 %v189
    %v266 = vunpack.c.h.b16 %v189
    %v267 = vunpack.c.l.b16 %v190
    %v268 = vunpack.c.h.b16 %v190
    %v269 = vunpack.c.l.b16 %v191
    %v270 = vunpack.c.h.b16 %v191
    %v271 = vunpack.c.l.b16 %v192
    %v272 = vunpack.c.h.b16 %v192
    %v273 = vunpack.c.l.b16 %v193
    %v274 = vunpack.c.h.b16 %v193
    %v275 = vunpack.c.l.b16 %v194
    %v276 = vunpack.c.h.b16 %v194
    %v277 = vunpack.c.l.b16 %v195
    %v278 = vunpack.c.h.b16 %v195
    %v279 = vunpack.c.l.b16 %v196
    %v280 = vunpack.c.h.b16 %v196
    %v281 = vunpack.c.l.b16 %v197
    %v282 = vunpack.c.h.b16 %v197
    %v283 = vunpack.c.l.b16 %v198
    %v284 = vunpack.c.h.b16 %v198
    %v285 = vunpack.c.l.b16 %v199
    %v286 = vunpack.c.h.b16 %v199
    %v287 = vunpack.c.l.b16 %v200
    %v288 = vunpack.c.h.b16 %v200
    %v289 = vunpack.c.l.b16 %v201
    %v290 = vunpack.c.h.b16 %v201
    %v291 = vunpack.c.l.b16 %v202
    %v292 = vunpack.c.h.b16 %v202
    %v293 = vunpack.c.l.b16 %v203
    %v294 = vunpack.c.h.b16 %v203
    %v295 = vunpack.c.l.b16 %v204
    %v296 = vunpack.c.h.b16 %v204
    %v297 = vunpack.c.l.b16 %v205
    %v298 = vunpack.c.h.b16 %v205
    %v299 = vunpack.c.l.b16 %v206
    %v300 = vunpack.c.h.b16 %v206
    %v301 = vunpack.c.l.b16 %v207
    %v302 = vunpack.c.h.b16 %v207
    %v303 = vunpack.c.l.b16 %v208
    %v304 = vunpack.c.h.b16 %v208
    %v305 = vunpack.c.l.b16 %v209
    %v306 = vunpack.c.h.b16 %v209
    %v307 = vunpack.c.l.b16 %v210
    %v308 = vunpack.c.h.b16 %v210
    %v309 = vunpack.c.l.b16 %v211
    %v310 = vunpack.c.h.b16 %v211
    %v311 = vunpack.c.l.b16 %v212
    %v312 = vunpack.c.h.b16 %v212
    %v313 = vunpack.c.l.b16 %v213
    %v314 = vunpack.c.h.b16 %v213
    %v315 = vunpack.c.l.b16 %v214
    %v316 = vunpack.c.h.b16 %v214
    %v317 = vpack.c.b16 %v255, %v253
    %v318 = vpack.c.b16 %v256, %v254
    %v319 = vpack.c.b16 %v259, %v257
    %v320 = vpack.c.b16 %v260, %v258
    %v321 = vpack.c.b16 %v263, %v261
    %v322 = vpack.c.b16 %v264, %v262
    %v323 = vpack.c.b16 %v267, %v265
    %v324 = vpack.c.b16 %v268, %v266
    %v325 = vpack.c.b16 %v271, %v269
    %v326 = vpack.c.b16 %v272, %v270
    %v327 = vpack.c.b16 %v275, %v273
    %v328 = vpack.c.b16 %v276, %v274
    %v329 = vpack.c.b16 %v279, %v277
    %v330 = vpack.c.b16 %v280, %v278
    %v331 = vpack.c.b16 %v283, %v281
    %v332 = vpack.c.b16 %v284, %v282
    %v333 = vpack.c.b16 %v287, %v285
    %v334 = vpack.c.b16 %v288, %v286
    %v335 = vpack.c.b16 %v291, %v289
    %v336 = vpack.c.b16 %v292, %v290
    %v337 = vpack.c.b16 %v295, %v293
    %v338 = vpack.c.b16 %v296, %v294
    %v339 = vpack.c.b16 %v299, %v297
    %v340 = vpack.c.b16 %v300, %v298
    %v341 = vpack.c.b16 %v303, %v301
    %v342 = vpack.c.b16 %v304, %v302
    %v343 = vpack.c.b16 %v307, %v305
    %v344 = vpack.c.b16 %v308, %v306
    %v345 = vpack.c.b16 %v311, %v309
    %v346 = vpack.c.b16 %v312, %v310
    %v347 = vpack.c.b16 %v315, %v313
    %v348 = vpack.c.b16 %v316, %v314
    %381 = vmatpush.bf16.msra.mxu0 %v331
    %382 = vmatpush.bf16.msra.mxu0 %v329
    %383 = vmatpush.bf16.msra.mxu0 %v327
    %384 = vmatpush.bf16.msra.mxu0 %v325
    %385 = vmatpush.bf16.msra.mxu0 %v323
    %386 = vmatpush.bf16.msra.mxu0 %v321
    %387 = vmatpush.bf16.msra.mxu0 %v319
    %388 = vmatpush.bf16.msra.mxu0 %v317
    %389 = vmatmul.bf16.gmra.mxu0 %v181
    %v390 = vpop.f32.mrf.mxu0
    %v391 = vadd.f32 %v217, %v390
    %v392 = vpop.f32.mrf.mxu0
    %393 = vdwg.mxu0
    %394 = vmatpush.bf16.msra.mxu0 %v347
    %395 = vmatpush.bf16.msra.mxu0 %v345
    %396 = vmatpush.bf16.msra.mxu0 %v343
    %397 = vmatpush.bf16.msra.mxu0 %v341
    %398 = vmatpush.bf16.msra.mxu0 %v339
    %399 = vmatpush.bf16.msra.mxu0 %v337
    %400 = vmatpush.bf16.msra.mxu0 %v335
    %401 = vmatpush.bf16.msra.mxu0 %v333
    %402 = vmatmul.bf16.gmra.mxu0 %v182
    %v403 = vpop.f32.mrf.mxu0
    %v404 = vadd.f32 %v391, %v403
    %v405 = vpop.f32.mrf.mxu0
    %406 = vdwg.mxu0
    %407 = vmatpush.bf16.msra.mxu0 %v332
    %408 = vmatpush.bf16.msra.mxu0 %v330
    %409 = vmatpush.bf16.msra.mxu0 %v328
    %410 = vmatpush.bf16.msra.mxu0 %v326
    %411 = vmatpush.bf16.msra.mxu0 %v324
    %412 = vmatpush.bf16.msra.mxu0 %v322
    %413 = vmatpush.bf16.msra.mxu0 %v320
    %414 = vmatpush.bf16.msra.mxu0 %v318
    %415 = vmatmul.bf16.gmra.mxu0 %v181
    %v416 = vpop.f32.mrf.mxu0
    %v417 = vadd.f32 %v218, %v416
    %v418 = vpop.f32.mrf.mxu0
    %419 = vdwg.mxu0
    %420 = vmatpush.bf16.msra.mxu0 %v348
    %421 = vmatpush.bf16.msra.mxu0 %v346
    %422 = vmatpush.bf16.msra.mxu0 %v344
    %423 = vmatpush.bf16.msra.mxu0 %v342
    %424 = vmatpush.bf16.msra.mxu0 %v340
    %425 = vmatpush.bf16.msra.mxu0 %v338
    %426 = vmatpush.bf16.msra.mxu0 %v336
    %427 = vmatpush.bf16.msra.mxu0 %v334
    %428 = vmatmul.bf16.gmra.mxu0 %v182
    %v429 = vpop.f32.mrf.mxu0
    %v430 = vadd.f32 %v417, %v429
    %v431 = vpop.f32.mrf.mxu0
    %432 = vdwg.mxu0
    %v433 = vmax.f32 %v404, 0.0
    %v434 = vmax.f32 %v430, 0.0
    %v435 = vpack.c.bf16 %v433, %v433
    %v436 = vpack.c.bf16 %v434, %v434
    %v437 = vld [vmem:[#allocation10] sm:$0xff]
    %v438 = vld [vmem:[#allocation10 + $0x8] sm:$0xff]
    %v439 = vld [vmem:[#allocation10 + $0x10] sm:$0xff]
    %v440 = vld [vmem:[#allocation10 + $0x18] sm:$0xff]
    %v441 = vld [vmem:[#allocation10 + $0x20] sm:$0xff]
    %v442 = vld [vmem:[#allocation10 + $0x28] sm:$0xff]
    %v443 = vld [vmem:[#allocation10 + $0x30] sm:$0xff]
    %v444 = vld [vmem:[#allocation10 + $0x38] sm:$0xff]
    %v445 = vld [vmem:[#allocation10 + $0x40] sm:$0xff]
    %v446 = vld [vmem:[#allocation10 + $0x48] sm:$0xff]
    %v447 = vld [vmem:[#allocation10 + $0x50] sm:$0xff]
    %v448 = vld [vmem:[#allocation10 + $0x58] sm:$0xff]
    %v449 = vld [vmem:[#allocation10 + $0x60] sm:$0xff]
    %v450 = vld [vmem:[#allocation10 + $0x68] sm:$0xff]
    %v451 = vld [vmem:[#allocation10 + $0x70] sm:$0xff]
    %v452 = vld [vmem:[#allocation10 + $0x78] sm:$0xff]
    %v453 = vld [vmem:[#allocation10 + $0x80] sm:$0xff]
    %v454 = vld [vmem:[#allocation10 + $0x88] sm:$0xff]
    %v455 = vld [vmem:[#allocation10 + $0x90] sm:$0xff]
    %v456 = vld [vmem:[#allocation10 + $0x98] sm:$0xff]
    %v457 = vld [vmem:[#allocation10 + $0xa0] sm:$0xff]
    %v458 = vld [vmem:[#allocation10 + $0xa8] sm:$0xff]
    %v459 = vld [vmem:[#allocation10 + $0xb0] sm:$0xff]
    %v460 = vld [vmem:[#allocation10 + $0xb8] sm:$0xff]
    %v461 = vld [vmem:[#allocation10 + $0xc0] sm:$0xff]
    %v462 = vld [vmem:[#allocation10 + $0xc8] sm:$0xff]
    %v463 = vld [vmem:[#allocation10 + $0xd0] sm:$0xff]
    %v464 = vld [vmem:[#allocation10 + $0xd8] sm:$0xff]
    %v465 = vld [vmem:[#allocation10 + $0xe0] sm:$0xff]
    %v466 = vld [vmem:[#allocation10 + $0xe8] sm:$0xff]
    %v467 = vld [vmem:[#allocation10 + $0xf0] sm:$0xff]
    %v468 = vld [vmem:[#allocation10 + $0xf8] sm:$0xff]
    %v469 = vld [vmem:[%s6] sm:$0x3]
    %v471 = vperm.slane %v469, 0
    %v472 = vperm.slane %v469, 1
    %v507 = vunpack.c.l.b16 %v437
    %v508 = vunpack.c.h.b16 %v437
    %v509 = vunpack.c.l.b16 %v438
    %v510 = vunpack.c.h.b16 %v438
    %v511 = vunpack.c.l.b16 %v439
    %v512 = vunpack.c.h.b16 %v439
    %v513 = vunpack.c.l.b16 %v440
    %v514 = vunpack.c.h.b16 %v440
    %v515 = vunpack.c.l.b16 %v441
    %v516 = vunpack.c.h.b16 %v441
    %v517 = vunpack.c.l.b16 %v442
    %v518 = vunpack.c.h.b16 %v442
    %v519 = vunpack.c.l.b16 %v443
    %v520 = vunpack.c.h.b16 %v443
    %v521 = vunpack.c.l.b16 %v444
    %v522 = vunpack.c.h.b16 %v444
    %v523 = vunpack.c.l.b16 %v445
    %v524 = vunpack.c.h.b16 %v445
    %v525 = vunpack.c.l.b16 %v446
    %v526 = vunpack.c.h.b16 %v446
    %v527 = vunpack.c.l.b16 %v447
    %v528 = vunpack.c.h.b16 %v447
    %v529 = vunpack.c.l.b16 %v448
    %v530 = vunpack.c.h.b16 %v448
    %v531 = vunpack.c.l.b16 %v449
    %v532 = vunpack.c.h.b16 %v449
    %v533 = vunpack.c.l.b16 %v450
    %v534 = vunpack.c.h.b16 %v450
    %v535 = vunpack.c.l.b16 %v451
    %v536 = vunpack.c.h.b16 %v451
    %v537 = vunpack.c.l.b16 %v452
    %v538 = vunpack.c.h.b16 %v452
    %v539 = vunpack.c.l.b16 %v453
    %v540 = vunpack.c.h.b16 %v453
    %v541 = vunpack.c.l.b16 %v454
    %v542 = vunpack.c.h.b16 %v454
    %v543 = vunpack.c.l.b16 %v455
    %v544 = vunpack.c.h.b16 %v455
    %v545 = vunpack.c.l.b16 %v456
    %v546 = vunpack.c.h.b16 %v456
    %v547 = vunpack.c.l.b16 %v457
    %v548 = vunpack.c.h.b16 %v457
    %v549 = vunpack.c.l.b16 %v458
    %v550 = vunpack.c.h.b16 %v458
    %v551 = vunpack.c.l.b16 %v459
    %v552 = vunpack.c.h.b16 %v459
    %v553 = vunpack.c.l.b16 %v460
    %v554 = vunpack.c.h.b16 %v460
    %v555 = vunpack.c.l.b16 %v461
    %v556 = vunpack.c.h.b16 %v461
    %v557 = vunpack.c.l.b16 %v462
    %v558 = vunpack.c.h.b16 %v462
    %v559 = vunpack.c.l.b16 %v463
    %v560 = vunpack.c.h.b16 %v463
    %v561 = vunpack.c.l.b16 %v464
    %v562 = vunpack.c.h.b16 %v464
    %v563 = vunpack.c.l.b16 %v465
    %v564 = vunpack.c.h.b16 %v465
    %v565 = vunpack.c.l.b16 %v466
    %v566 = vunpack.c.h.b16 %v466
    %v567 = vunpack.c.l.b16 %v467
    %v568 = vunpack.c.h.b16 %v467
    %v569 = vunpack.c.l.b16 %v468
    %v570 = vunpack.c.h.b16 %v468
    %v571 = vpack.c.b16 %v509, %v507
    %v572 = vpack.c.b16 %v510, %v508
    %v573 = vpack.c.b16 %v513, %v511
    %v574 = vpack.c.b16 %v514, %v512
    %v575 = vpack.c.b16 %v517, %v515
    %v576 = vpack.c.b16 %v518, %v516
    %v577 = vpack.c.b16 %v521, %v519
    %v578 = vpack.c.b16 %v522, %v520
    %v579 = vpack.c.b16 %v525, %v523
    %v580 = vpack.c.b16 %v526, %v524
    %v581 = vpack.c.b16 %v529, %v527
    %v582 = vpack.c.b16 %v530, %v528
    %v583 = vpack.c.b16 %v533, %v531
    %v584 = vpack.c.b16 %v534, %v532
    %v585 = vpack.c.b16 %v537, %v535
    %v586 = vpack.c.b16 %v538, %v536
    %v587 = vpack.c.b16 %v541, %v539
    %v588 = vpack.c.b16 %v542, %v540
    %v589 = vpack.c.b16 %v545, %v543
    %v590 = vpack.c.b16 %v546, %v544
    %v591 = vpack.c.b16 %v549, %v547
    %v592 = vpack.c.b16 %v550, %v548
    %v593 = vpack.c.b16 %v553, %v551
    %v594 = vpack.c.b16 %v554, %v552
    %v595 = vpack.c.b16 %v557, %v555
    %v596 = vpack.c.b16 %v558, %v556
    %v597 = vpack.c.b16 %v561, %v559
    %v598 = vpack.c.b16 %v562, %v560
    %v599 = vpack.c.b16 %v565, %v563
    %v600 = vpack.c.b16 %v566, %v564
    %v601 = vpack.c.b16 %v569, %v567
    %v602 = vpack.c.b16 %v570, %v568
    %635 = vmatpush.bf16.msra.mxu0 %v585
    %636 = vmatpush.bf16.msra.mxu0 %v583
    %637 = vmatpush.bf16.msra.mxu0 %v581
    %638 = vmatpush.bf16.msra.mxu0 %v579
    %639 = vmatpush.bf16.msra.mxu0 %v577
    %640 = vmatpush.bf16.msra.mxu0 %v575
    %641 = vmatpush.bf16.msra.mxu0 %v573
    %642 = vmatpush.bf16.msra.mxu0 %v571
    %643 = vmatmul.bf16.gmra.mxu0 %v435
    %v644 = vpop.f32.mrf.mxu0
    %v645 = vadd.f32 %v471, %v644
    %v646 = vpop.f32.mrf.mxu0
    %647 = vdwg.mxu0
    %648 = vmatpush.bf16.msra.mxu0 %v601
    %649 = vmatpush.bf16.msra.mxu0 %v599
    %650 = vmatpush.bf16.msra.mxu0 %v597
    %651 = vmatpush.bf16.msra.mxu0 %v595
    %652 = vmatpush.bf16.msra.mxu0 %v593
    %653 = vmatpush.bf16.msra.mxu0 %v591
    %654 = vmatpush.bf16.msra.mxu0 %v589
    %655 = vmatpush.bf16.msra.mxu0 %v587
    %656 = vmatmul.bf16.gmra.mxu0 %v436
    %v657 = vpop.f32.mrf.mxu0
    %v658 = vadd.f32 %v645, %v657
    %v659 = vpop.f32.mrf.mxu0
    %660 = vdwg.mxu0
    %661 = vmatpush.bf16.msra.mxu0 %v586
    %662 = vmatpush.bf16.msra.mxu0 %v584
    %663 = vmatpush.bf16.msra.mxu0 %v582
    %664 = vmatpush.bf16.msra.mxu0 %v580
    %665 = vmatpush.bf16.msra.mxu0 %v578
    %666 = vmatpush.bf16.msra.mxu0 %v576
    %667 = vmatpush.bf16.msra.mxu0 %v574
    %668 = vmatpush.bf16.msra.mxu0 %v572
    %669 = vmatmul.bf16.gmra.mxu0 %v435
    %v670 = vpop.f32.mrf.mxu0
    %v671 = vadd.f32 %v472, %v670
    %v672 = vpop.f32.mrf.mxu0
    %673 = vdwg.mxu0
    %674 = vmatpush.bf16.msra.mxu0 %v602
    %675 = vmatpush.bf16.msra.mxu0 %v600
    %676 = vmatpush.bf16.msra.mxu0 %v598
    %677 = vmatpush.bf16.msra.mxu0 %v596
    %678 = vmatpush.bf16.msra.mxu0 %v594
    %679 = vmatpush.bf16.msra.mxu0 %v592
    %680 = vmatpush.bf16.msra.mxu0 %v590
    %681 = vmatpush.bf16.msra.mxu0 %v588
    %682 = vmatmul.bf16.gmra.mxu0 %v436
    %v683 = vpop.f32.mrf.mxu0
    %v684 = vadd.f32 %v671, %v683
    %v685 = vpop.f32.mrf.mxu0
    %686 = vdwg.mxu0
    %v687 = vmax.f32 %v658, 0.0
    %v688 = vmax.f32 %v684, 0.0
    %v689 = vpack.c.bf16 %v687, %v687
    %v690 = vpack.c.bf16 %v688, %v688
    %v691 = vld [vmem:[#allocation11] sm:$0xf]
    %v692 = vld [vmem:[#allocation11 + $0x4] sm:$0xf]
    %v693 = vld [vmem:[#allocation11 + $0x8] sm:$0xf]
    %v694 = vld [vmem:[#allocation11 + $0xc] sm:$0xf]
    %v695 = vld [vmem:[#allocation11 + $0x10] sm:$0xf]
    %v696 = vld [vmem:[#allocation11 + $0x14] sm:$0xf]
    %v697 = vld [vmem:[#allocation11 + $0x18] sm:$0xf]
    %v698 = vld [vmem:[#allocation11 + $0x1c] sm:$0xf]
    %v699 = vld [vmem:[#allocation11 + $0x20] sm:$0xf]
    %v700 = vld [vmem:[#allocation11 + $0x24] sm:$0xf]
    %v701 = vld [vmem:[#allocation11 + $0x28] sm:$0xf]
    %v702 = vld [vmem:[#allocation11 + $0x2c] sm:$0xf]
    %v703 = vld [vmem:[#allocation11 + $0x30] sm:$0xf]
    %v704 = vld [vmem:[#allocation11 + $0x34] sm:$0xf]
    %v705 = vld [vmem:[#allocation11 + $0x38] sm:$0xf]
    %v706 = vld [vmem:[#allocation11 + $0x3c] sm:$0xf]
    %v707 = vld [vmem:[#allocation11 + $0x40] sm:$0xf]
    %v708 = vld [vmem:[#allocation11 + $0x44] sm:$0xf]
    %v709 = vld [vmem:[#allocation11 + $0x48] sm:$0xf]
    %v710 = vld [vmem:[#allocation11 + $0x4c] sm:$0xf]
    %v711 = vld [vmem:[#allocation11 + $0x50] sm:$0xf]
    %v712 = vld [vmem:[#allocation11 + $0x54] sm:$0xf]
    %v713 = vld [vmem:[#allocation11 + $0x58] sm:$0xf]
    %v714 = vld [vmem:[#allocation11 + $0x5c] sm:$0xf]
    %v715 = vld [vmem:[#allocation11 + $0x60] sm:$0xf]
    %v716 = vld [vmem:[#allocation11 + $0x64] sm:$0xf]
    %v717 = vld [vmem:[#allocation11 + $0x68] sm:$0xf]
    %v718 = vld [vmem:[#allocation11 + $0x6c] sm:$0xf]
    %v719 = vld [vmem:[#allocation11 + $0x70] sm:$0xf]
    %v720 = vld [vmem:[#allocation11 + $0x74] sm:$0xf]
    %v721 = vld [vmem:[#allocation11 + $0x78] sm:$0xf]
    %v722 = vld [vmem:[#allocation11 + $0x7c] sm:$0xf]
    %v723 = vld [vmem:[%s8] sm:$0x1]
    %v725 = vperm.slane %v723, 0
    %v759 = vunpack.c.l.b16 %v691
    %v760 = vunpack.c.l.b16 %v692
    %v761 = vunpack.c.l.b16 %v693
    %v762 = vunpack.c.l.b16 %v694
    %v763 = vunpack.c.l.b16 %v695
    %v764 = vunpack.c.l.b16 %v696
    %v765 = vunpack.c.l.b16 %v697
    %v766 = vunpack.c.l.b16 %v698
    %v767 = vunpack.c.l.b16 %v699
    %v768 = vunpack.c.l.b16 %v700
    %v769 = vunpack.c.l.b16 %v701
    %v770 = vunpack.c.l.b16 %v702
    %v771 = vunpack.c.l.b16 %v703
    %v772 = vunpack.c.l.b16 %v704
    %v773 = vunpack.c.l.b16 %v705
    %v774 = vunpack.c.l.b16 %v706
    %v775 = vunpack.c.l.b16 %v707
    %v776 = vunpack.c.l.b16 %v708
    %v777 = vunpack.c.l.b16 %v709
    %v778 = vunpack.c.l.b16 %v710
    %v779 = vunpack.c.l.b16 %v711
    %v780 = vunpack.c.l.b16 %v712
    %v781 = vunpack.c.l.b16 %v713
    %v782 = vunpack.c.l.b16 %v714
    %v783 = vunpack.c.l.b16 %v715
    %v784 = vunpack.c.l.b16 %v716
    %v785 = vunpack.c.l.b16 %v717
    %v786 = vunpack.c.l.b16 %v718
    %v787 = vunpack.c.l.b16 %v719
    %v788 = vunpack.c.l.b16 %v720
    %v789 = vunpack.c.l.b16 %v721
    %v790 = vunpack.c.l.b16 %v722
    %v791 = vpack.c.b16 %v760, %v759
    %v792 = vpack.c.b16 %v762, %v761
    %v793 = vpack.c.b16 %v764, %v763
    %v794 = vpack.c.b16 %v766, %v765
    %v795 = vpack.c.b16 %v768, %v767
    %v796 = vpack.c.b16 %v770, %v769
    %v797 = vpack.c.b16 %v772, %v771
    %v798 = vpack.c.b16 %v774, %v773
    %v799 = vpack.c.b16 %v776, %v775
    %v800 = vpack.c.b16 %v778, %v777
    %v801 = vpack.c.b16 %v780, %v779
    %v802 = vpack.c.b16 %v782, %v781
    %v803 = vpack.c.b16 %v784, %v783
    %v804 = vpack.c.b16 %v786, %v785
    %v805 = vpack.c.b16 %v788, %v787
    %v806 = vpack.c.b16 %v790, %v789
    %823 = vmatpush.bf16.msra.mxu0 %v798
    %824 = vmatpush.bf16.msra.mxu0 %v797
    %825 = vmatpush.bf16.msra.mxu0 %v796
    %826 = vmatpush.bf16.msra.mxu0 %v795
    %827 = vmatpush.bf16.msra.mxu0 %v794
    %828 = vmatpush.bf16.msra.mxu0 %v793
    %829 = vmatpush.bf16.msra.mxu0 %v792
    %830 = vmatpush.bf16.msra.mxu0 %v791
    %831 = vmatmul.bf16.gmra.mxu0 %v689
    %v832 = vpop.f32.mrf.mxu0
    %v833 = vadd.f32 %v725, %v832
    %v834 = vpop.f32.mrf.mxu0
    %835 = vdwg.mxu0
    %836 = vmatpush.bf16.msra.mxu0 %v806
    %837 = vmatpush.bf16.msra.mxu0 %v805
    %838 = vmatpush.bf16.msra.mxu0 %v804
    %839 = vmatpush.bf16.msra.mxu0 %v803
    %840 = vmatpush.bf16.msra.mxu0 %v802
    %841 = vmatpush.bf16.msra.mxu0 %v801
    %842 = vmatpush.bf16.msra.mxu0 %v800
    %843 = vmatpush.bf16.msra.mxu0 %v799
    %844 = vmatmul.bf16.gmra.mxu0 %v690
    %v845 = vpop.f32.mrf.mxu0
    %v846 = vadd.f32 %v833, %v845
    %v847 = vpop.f32.mrf.mxu0
    %848 = vdwg.mxu0
    %849 = vst [vmem:[#allocation13] sm:$0xff] %v846
    // Predicated region
    $region62: #{tpu_custom_call.1} parent=1 // pred_check
      _
    $region63: #{tpu_custom_call.1} parent=1 // pred_check_branch
      %851 = sbr.rel (0) target = $region65
    $region64: #{tpu_custom_call.1} parent=1 // pred_region
      %853 = vsyncadd [#allocation4], 0
      %s855 = sshll.u32 [#allocation13], 4
      %s856 = int_to_ptr.vmem [resolvable:$true] %s855
      %s857 = sshll.u32 %s9, 4
      %s858 = int_to_ptr.hbm [resolvable:$true] %s857
      %860 = dma.vmem_to_hbm [thread:$0]  %s856, 128, %s858, [#allocation4]
    $region65: #{tpu_custom_call.1} parent=1 // pred_fallthru
      _
    // Predicated region
    $region66: #{tpu_custom_call.1} parent=1 // pred_check
      _
    $region67: #{tpu_custom_call.1} parent=1 // pred_check_branch
      %862 = sbr.rel (0) target = $region69
    $region68: #{tpu_custom_call.1} parent=1 // pred_region
      %864 = dma.done [#allocation4], 128
    $region69: #{tpu_custom_call.1} parent=1 // pred_fallthru
      _
    %865 = vsyncpa [#allocation3], 1
    %866 = vsyncpa [#allocation6], 1
    %867 = vsyncpa [#allocation9], 1
    %868 = vsyncpa [#allocation12], 1
    %869 = vsyncpa [#allocation4], 1

</llo_original>
